<compile_context>
chip_gen: v7x
topology: tpu7x:2x2x1
jax: 0.10.0
libtpu: 0.0.40
codegen_flags: <defaults>
</compile_context>

<pallas_src>
import functools

import jax
import jax.numpy as jnp
from jax.experimental import pallas as pl
from jax.experimental.pallas import tpu as pltpu

BN_EPS = 1e-5  # PyTorch BatchNorm1d default


def _round_up(n, m):
    return (n + m - 1) // m * m


def make_mlp_kernel(num_hidden):
    """Fused [dot -> bias -> ReLU]*num_hidden -> dot -> +b -> sigmoid kernel."""

    def kernel(x_ref, *refs):
        out_ref = refs[-1]
        prm = refs[:-1]
        compute_dtype = prm[0].dtype                       # weights' dtype (bf16 or f32)

        # Cast x in-kernel on the VPU (VALU has plenty of slack) instead of a separate
        # wrapper-side XLA cast pass -> halves x HBM traffic.
        h = x_ref[...].astype(compute_dtype)               # (bt, F)
        for li in range(num_hidden):
            w = prm[2 * li][...]                           # (K, Np), compute_dtype
            b = prm[2 * li + 1][...]                       # (1, Np), f32
            z = jnp.dot(h, w, preferred_element_type=jnp.float32) + b
            # ReLU in f32 (works on v5e which lacks a bf16 VPU); BN already folded into w/b.
            h = jnp.maximum(z, 0.0).astype(compute_dtype)
        # TODO(synk): Dropout only has an effect in training mode (random mask);
        # eval-mode forward is identity, which is what we implement here.

        w_out = prm[2 * num_hidden][...]                   # (1, Hp), compute_dtype
        b_out = prm[2 * num_hidden + 1][0, 0]              # f32 scalar from SMEM
        # Contract last dims of (1, Hp) and (bt, Hp) -> (1, bt): batch lands on the lane
        # axis, so the store below is lane-dense (no masked 1-lane stores).
        logits = jax.lax.dot_general(
            w_out, h, (((1,), (1,)), ((), ())),
            preferred_element_type=jnp.float32) + b_out
        out_ref[0] = jax.nn.sigmoid(logits).astype(out_ref.dtype)

    return kernel


def _fold_and_pad_params(params, num_hidden, compute_dtype):
    """Fold BatchNorm into each Linear; zero-pad hidden widths to multiples of 128.

    Padding is exact: padded output units have zero weight/bias -> 0 after ReLU, and
    the matching extra input rows of the next layer are zero.
    """
    flat = []
    prev_pad = 0
    for li in range(1, num_hidden + 1):
        w = params[f"w{li}"].astype(jnp.float32)             # (K, N)  (in, out) layout
        b = params[f"b{li}"].astype(jnp.float32)             # (1, N)
        s = params[f"g{li}"] * jax.lax.rsqrt(params[f"v{li}"] + BN_EPS)
        w_f = w * s                                          # BN scale folded per column
        b_f = (b - params[f"m{li}"]) * s + params[f"be{li}"]
        n = w.shape[1]
        n_pad = _round_up(n, 128)
        w_f = jnp.pad(w_f, ((0, prev_pad), (0, n_pad - n)))
        b_f = jnp.pad(b_f, ((0, 0), (0, n_pad - n)))
        flat.append(w_f.astype(compute_dtype))
        flat.append(b_f)                                     # bias stays f32
        prev_pad = n_pad - n
    # Final Linear(prev, 1): keep it as a (1, Hp) row for the lane-dense contraction.
    w_out = params[f"w{num_hidden + 1}"].astype(jnp.float32).T   # (1, H)
    b_out = params[f"b{num_hidden + 1}"].astype(jnp.float32)     # (1, 1) -> SMEM
    w_out = jnp.pad(w_out, ((0, 0), (0, prev_pad)))
    flat.append(w_out.astype(compute_dtype))
    flat.append(b_out)
    return flat


def _pick_batch_tile(batch, in_features, max_hidden_pad):
    """Batch-tile sizing:
       * large enough to amortize the ~0.35us per-grid-step overhead (the kernel is
         step-overhead / input-DMA bound at these layer sizes, not MXU/VPU bound),
       * sized from a conservative VMEM budget (fits v7x's 64 MiB physical and v5e's
         default scope once vmem_limit_bytes is raised),
       * capped so that >= 2 (ideally >= 4) tiles exist when the batch allows, keeping
         both v7x TensorCores busy under dimension_semantics=("parallel",)."""
    # Rough per-row VMEM: double-buffered f32 x block + a few live f32 (bt, Hp) tiles.
    bytes_per_row = 4 * (2 * in_features + 4 * max_hidden_pad)
    budget = 24 * 1024 * 1024
    bt = budget // max(bytes_per_row, 1)
    bt = min(bt, 4096)                          # diminishing returns past ~4K rows
    if batch > 512:
        bt = min(bt, -(-batch // 4))            # >= 4 tiles -> both v7x TCs get work
    elif batch > 256:
        bt = min(bt, 256)                       # 2 tiles
    else:
        bt = 128
    return max(128, (bt // 128) * 128)


@functools.partial(jax.jit, static_argnames=("batch_tile", "compute_dtype"))
def binary_classifier_forward(x, params, *, batch_tile=None,
                              compute_dtype=jnp.bfloat16):
    B, F = x.shape
    num_hidden = (len(params) - 2) // 6      # 6 tensors per hidden layer, 2 for output

    hidden_pads = [_round_up(params[f"w{li}"].shape[1], 128)
                   for li in range(1, num_hidden + 1)]
    if batch_tile is None:
        batch_tile = _pick_batch_tile(B, F, max(hidden_pads))
    assert batch_tile % 128 == 0, "batch_tile must be a multiple of 128"

    flat = _fold_and_pad_params(params, num_hidden, compute_dtype)

    num_tiles = pl.cdiv(B, batch_tile)
    b_pad = num_tiles * batch_tile
    xp = x                                    # native dtype; kernel casts on the VPU
    if b_pad != B:                            # batch remainder: pad rows (sliced off later)
        xp = jnp.pad(xp, ((0, b_pad - B), (0, 0)))

    def const_spec(p):
        ndim = p.ndim
        # Full-array block, same block every grid step -> stays resident in VMEM.
        return pl.BlockSpec(p.shape, lambda i, _nd=ndim: (0,) * _nd)

    in_specs = (
        [pl.BlockSpec((batch_tile, F), lambda i: (i, 0))]
        + [const_spec(p) for p in flat[:-1]]
        # (1,1) output bias is a scalar -> SMEM (no (8,128)-padded VMEM tile).
        + [pl.BlockSpec(memory_space=pltpu.MemorySpace.SMEM)]
    )

    grid_spec = pltpu.PrefetchScalarGridSpec(
        num_scalar_prefetch=0,
        grid=(num_tiles,),
        in_specs=in_specs,
        # Lane-dense output: one (1, batch_tile) row per tile (batch on lanes).
        out_specs=pl.BlockSpec((1, 1, batch_tile), lambda i: (i, 0, 0)),
    )

    out = pl.pallas_call(
        make_mlp_kernel(num_hidden),
        out_shape=jax.ShapeDtypeStruct((num_tiles, 1, batch_tile), x.dtype),
        grid_spec=grid_spec,
        compiler_params=pltpu.CompilerParams(
            dimension_semantics=("parallel",),      # shards tiles across v7x's two TCs
            vmem_limit_bytes=64 * 1024 * 1024),     # > v5e's 16 MiB / v7x's 32 MiB scope
    )(xp, *flat)

    return out.reshape(b_pad, 1)[:B]


def init_params(key, input_shape, hidden_sizes):
    """Deterministic synthetic parameters matching the PyTorch module's shapes."""
    params = {}
    sizes = [input_shape] + list(hidden_sizes)
    keys = jax.random.split(key, 6 * len(hidden_sizes) + 2)
    k = 0
    for li in range(len(hidden_sizes)):
        fan_in, fan_out = sizes[li], sizes[li + 1]
        bound = 1.0 / (fan_in ** 0.5)
        # nn.Linear(fan_in, fan_out): weight (out, in) -> stored transposed (in, out)
        params[f"w{li + 1}"] = jax.random.uniform(
            keys[k], (fan_in, fan_out), jnp.float32, -bound, bound); k += 1
        params[f"b{li + 1}"] = jax.random.uniform(
            keys[k], (1, fan_out), jnp.float32, -bound, bound); k += 1
        # BatchNorm1d(fan_out): gamma, beta, running_mean, running_var
        params[f"g{li + 1}"] = 1.0 + 0.1 * jax.random.normal(
            keys[k], (1, fan_out), jnp.float32); k += 1
        params[f"be{li + 1}"] = 0.1 * jax.random.normal(
            keys[k], (1, fan_out), jnp.float32); k += 1
        params[f"m{li + 1}"] = 0.1 * jax.random.normal(
            keys[k], (1, fan_out), jnp.float32); k += 1
        params[f"v{li + 1}"] = 1.0 + 0.1 * jax.random.uniform(
            keys[k], (1, fan_out), jnp.float32); k += 1
    fan_in = sizes[-1]
    bound = 1.0 / (fan_in ** 0.5)
    nl = len(hidden_sizes) + 1
    params[f"w{nl}"] = jax.random.uniform(
        keys[k], (fan_in, 1), jnp.float32, -bound, bound); k += 1
    params[f"b{nl}"] = jax.random.uniform(
        keys[k], (1, 1), jnp.float32, -bound, bound); k += 1
    return params


def reference_forward(x, p, num_hidden):
    """Pure-JAX reference with the original (unfolded, unpadded) parameters."""
    h = x
    for li in range(1, num_hidden + 1):
        h = h @ p[f"w{li}"] + p[f"b{li}"]
        h = (h - p[f"m{li}"]) * jax.lax.rsqrt(p[f"v{li}"] + BN_EPS) * p[f"g{li}"] \
            + p[f"be{li}"]
        h = jnp.maximum(h, 0.0)
    nl = num_hidden + 1
    return jax.nn.sigmoid(h @ p[f"w{nl}"] + p[f"b{nl}"])


if __name__ == "__main__":
    INPUT_SHAPE = 32          # number of input features
    HIDDEN_SIZES = [64, 32]   # hidden_sizes
    BATCH = 200               # not a multiple of the tile -> exercises the padding path

    key = jax.random.PRNGKey(0)
    kx, kp = jax.random.split(key)
    x = jax.random.normal(kx, (BATCH, INPUT_SHAPE), jnp.float32)
    params = init_params(kp, INPUT_SHAPE, HIDDEN_SIZES)

    ref = reference_forward(x, params, len(HIDDEN_SIZES))

    # f32 compute path: checks BN folding / padding / lane-dense output / SMEM bias.
    out_f32 = jax.block_until_ready(
        binary_classifier_forward(x, params, batch_tile=128,
                                  compute_dtype=jnp.float32))
    assert out_f32.shape == (BATCH, 1)
    assert jnp.allclose(out_f32, ref, atol=5e-3), "f32 kernel mismatch vs reference"

    # bf16 compute path (default / fast) with auto batch-tile selection.
    # NOTE: bf16 MXU inputs are an intentional precision tradeoff vs PyTorch f32.
    out_bf16 = jax.block_until_ready(binary_classifier_forward(x, params))
    assert out_bf16.shape == (BATCH, 1)
    assert jnp.allclose(out_bf16, ref, atol=2e-2), "bf16 kernel mismatch vs reference"

    print("KERNEL_OK")
</pallas_src>

<mosaic_0001>
module attributes {stable_mosaic.version = 11 : i64} {
  func.func @kernel(%arg0: i32, %arg1: memref<128x32xf32, #tpu.memory_space<vmem>>, %arg2: memref<32x128xf32, #tpu.memory_space<vmem>>, %arg3: memref<1x128xf32, #tpu.memory_space<vmem>>, %arg4: memref<128x128xf32, #tpu.memory_space<vmem>>, %arg5: memref<1x128xf32, #tpu.memory_space<vmem>>, %arg6: memref<1x128xf32, #tpu.memory_space<vmem>>, %arg7: memref<1x1xf32, #tpu.memory_space<smem>>, %arg8: memref<1x1x128xf32, #tpu.memory_space<vmem>>) attributes {dimension_semantics = [#tpu.dimension_semantics<parallel>], iteration_bounds = array<i64: 2>, scalar_prefetch = 0 : i64, scratch_operands = 0 : i64, tpu.core_type = #tpu.core_type<tc>, window_params = [{transform_indices = @transform_0, window_bounds = array<i64: 128, 32>}, {pipeline_mode = #tpu.pipeline_mode<synchronous>, transform_indices = @transform_1, window_bounds = array<i64: 32, 128>}, {pipeline_mode = #tpu.pipeline_mode<synchronous>, transform_indices = @transform_2, window_bounds = array<i64: 1, 128>}, {pipeline_mode = #tpu.pipeline_mode<synchronous>, transform_indices = @transform_3, window_bounds = array<i64: 128, 128>}, {pipeline_mode = #tpu.pipeline_mode<synchronous>, transform_indices = @transform_4, window_bounds = array<i64: 1, 128>}, {pipeline_mode = #tpu.pipeline_mode<synchronous>, transform_indices = @transform_5, window_bounds = array<i64: 1, 128>}, {transform_indices = @transform_6, window_bounds = array<i64: 1, 1>}, {transform_indices = @transform_7, window_bounds = array<i64: 1, 1, 128>}]} {
    %c0 = arith.constant 0 : index
    %c0_0 = arith.constant 0 : index
    %0 = vector.load %arg1[%c0, %c0_0] : memref<128x32xf32, #tpu.memory_space<vmem>>, vector<128x32xf32>
    %c0_1 = arith.constant 0 : index
    %c0_2 = arith.constant 0 : index
    %1 = vector.load %arg2[%c0_1, %c0_2] : memref<32x128xf32, #tpu.memory_space<vmem>>, vector<32x128xf32>
    %c0_3 = arith.constant 0 : index
    %c0_4 = arith.constant 0 : index
    %2 = vector.load %arg3[%c0_3, %c0_4] : memref<1x128xf32, #tpu.memory_space<vmem>>, vector<1x128xf32>
    %cst = arith.constant dense<0.000000e+00> : vector<128x128xf32>
    %3 = tpu.matmul %0, %1, %cst {dimension_numbers = #tpu.dot_dimension_numbers<[1], [0], [0], [1], [0, 0, 1, 1], [], []>} : vector<128x32xf32>, vector<32x128xf32>, vector<128x128xf32> -> vector<128x128xf32>
    %4 = vector.broadcast %2 : vector<1x128xf32> to vector<128x128xf32>
    %5 = arith.addf %3, %4 : vector<128x128xf32>
    %cst_5 = arith.constant 0.000000e+00 : f32
    %6 = vector.broadcast %cst_5 : f32 to vector<128x128xf32>
    %7 = arith.maximumf %5, %6 : vector<128x128xf32>
    %c0_6 = arith.constant 0 : index
    %c0_7 = arith.constant 0 : index
    %8 = vector.load %arg4[%c0_6, %c0_7] : memref<128x128xf32, #tpu.memory_space<vmem>>, vector<128x128xf32>
    %c0_8 = arith.constant 0 : index
    %c0_9 = arith.constant 0 : index
    %9 = vector.load %arg5[%c0_8, %c0_9] : memref<1x128xf32, #tpu.memory_space<vmem>>, vector<1x128xf32>
    %cst_10 = arith.constant dense<0.000000e+00> : vector<128x128xf32>
    %10 = tpu.matmul %7, %8, %cst_10 {dimension_numbers = #tpu.dot_dimension_numbers<[1], [0], [0], [1], [0, 0, 1, 1], [], []>} : vector<128x128xf32>, vector<128x128xf32>, vector<128x128xf32> -> vector<128x128xf32>
    %11 = vector.broadcast %9 : vector<1x128xf32> to vector<128x128xf32>
    %12 = arith.addf %10, %11 : vector<128x128xf32>
    %cst_11 = arith.constant 0.000000e+00 : f32
    %13 = vector.broadcast %cst_11 : f32 to vector<128x128xf32>
    %14 = arith.maximumf %12, %13 : vector<128x128xf32>
    %c0_12 = arith.constant 0 : index
    %c0_13 = arith.constant 0 : index
    %15 = vector.load %arg6[%c0_12, %c0_13] : memref<1x128xf32, #tpu.memory_space<vmem>>, vector<1x128xf32>
    %c0_14 = arith.constant 0 : index
    %c0_15 = arith.constant 0 : index
    %16 = memref.load %arg7[%c0_14, %c0_15] : memref<1x1xf32, #tpu.memory_space<smem>>
    %cst_16 = arith.constant dense<0.000000e+00> : vector<1x128xf32>
    %17 = tpu.matmul %15, %14, %cst_16 {dimension_numbers = #tpu.dot_dimension_numbers<[1], [1], [0], [0], [0, 0, 1, 0], [], []>} : vector<1x128xf32>, vector<128x128xf32>, vector<1x128xf32> -> vector<1x128xf32>
    %18 = vector.broadcast %16 : f32 to vector<1x128xf32>
    %19 = arith.addf %17, %18 : vector<1x128xf32>
    %20 = arith.negf %19 : vector<1x128xf32>
    %21 = math.exp %20 : vector<1x128xf32>
    %cst_17 = arith.constant 1.000000e+00 : f32
    %22 = vector.broadcast %cst_17 : f32 to vector<1x128xf32>
    %23 = arith.addf %22, %21 : vector<1x128xf32>
    %24 = arith.divf %22, %23 : vector<1x128xf32>
    %c0_18 = arith.constant 0 : index
    %c0_19 = arith.constant 0 : index
    %c0_20 = arith.constant 0 : index
    %25 = vector.load %arg8[%c0_18, %c0_19, %c0_20] : memref<1x1x128xf32, #tpu.memory_space<vmem>>, vector<1x1x128xf32>
    %26 = vector.shape_cast %25 : vector<1x1x128xf32> to vector<1x128xf32>
    %27 = vector.shape_cast %24 : vector<1x128xf32> to vector<1x1x128xf32>
    tpu.vector_store %arg8[%c0_18, %c0_19, %c0_20], %27 {strides = array<i32>} : memref<1x1x128xf32, #tpu.memory_space<vmem>>, vector<1x1x128xf32>,
    return
  }
  func.func @transform_0(%arg0: i32) -> (i32, i32) {
    %c0_i32 = arith.constant 0 : i32
    %c0_i32_0 = arith.constant 0 : i32
    return %arg0, %c0_i32 : i32, i32
  }
  func.func @transform_1(%arg0: i32) -> (i32, i32) {
    %c0_i32 = arith.constant 0 : i32
    %c0_i32_0 = arith.constant 0 : i32
    %c0_i32_1 = arith.constant 0 : i32
    return %c0_i32, %c0_i32_0 : i32, i32
  }
  func.func @transform_2(%arg0: i32) -> (i32, i32) {
    %c0_i32 = arith.constant 0 : i32
    %c0_i32_0 = arith.constant 0 : i32
    %c0_i32_1 = arith.constant 0 : i32
    return %c0_i32, %c0_i32_0 : i32, i32
  }
  func.func @transform_3(%arg0: i32) -> (i32, i32) {
    %c0_i32 = arith.constant 0 : i32
    %c0_i32_0 = arith.constant 0 : i32
    %c0_i32_1 = arith.constant 0 : i32
    return %c0_i32, %c0_i32_0 : i32, i32
  }
  func.func @transform_4(%arg0: i32) -> (i32, i32) {
    %c0_i32 = arith.constant 0 : i32
    %c0_i32_0 = arith.constant 0 : i32
    %c0_i32_1 = arith.constant 0 : i32
    return %c0_i32, %c0_i32_0 : i32, i32
  }
  func.func @transform_5(%arg0: i32) -> (i32, i32) {
    %c0_i32 = arith.constant 0 : i32
    %c0_i32_0 = arith.constant 0 : i32
    %c0_i32_1 = arith.constant 0 : i32
    return %c0_i32, %c0_i32_0 : i32, i32
  }
  func.func @transform_6(%arg0: i32) -> (i32, i32) {
    %c0_i32 = arith.constant 0 : i32
    %c0_i32_0 = arith.constant 0 : i32
    %c0_i32_1 = arith.constant 0 : i32
    return %c0_i32, %c0_i32_0 : i32, i32
  }
  func.func @transform_7(%arg0: i32) -> (i32, i32, i32) {
    %c0_i32 = arith.constant 0 : i32
    %c0_i32_0 = arith.constant 0 : i32
    %c0_i32_1 = arith.constant 0 : i32
    return %arg0, %c0_i32, %c0_i32_0 : i32, i32, i32
  }
}

</mosaic_0001>

<llo_original>
// kernel: binary_classifier_forward.1
$region0: #{binary_classifier_forward.1}
  #allocation0 [shape = 'u32[]', space=smem, size = 0x4, offset = 0x4, fixed_abs, tag = 'smem constant byte address 0x4 - core index']
  #allocation1 [shape = 'u32[144,128]{1,0:T(1,128)}', space=vmem, size = 0x12000, scoped, tag = 'internal scratch']
  #allocation2 [shape = 'f32[1,1]{1,0:T(1,128)S(6)}', space=smem, size = 0x200, scoped, tag = 'scoped memory for binary_classifier_forward.1']
  %s0 = inlined_call_operand.hbm [shape: f32[256,32], index: 0, kind: input, shape index: {}]
  %s1 = inlined_call_operand.hbm [shape: f32[32,128], index: 1, kind: input, shape index: {}]
  %s2 = inlined_call_operand.hbm [shape: f32[1,128], index: 2, kind: input, shape index: {}]
  %s3 = inlined_call_operand.hbm [shape: f32[128,128], index: 3, kind: input, shape index: {}]
  %s4 = inlined_call_operand.hbm [shape: f32[1,128], index: 4, kind: input, shape index: {}]
  %s5 = inlined_call_operand.hbm [shape: f32[1,128], index: 5, kind: input, shape index: {}]
  %s6 = inlined_call_operand.<no memory space> [shape: f32[1,1], index: 6, kind: input, shape index: {}]
  %s7 = inlined_call_operand.hbm [shape: f32[2,1,128], index: 7, kind: output, shape index: {}]
  %s8 = sld [smem:[#allocation0]]
  $region85: #{binary_classifier_forward.1} parent=0
    _
  %s10 = ssub.s32 1, %s8
  %s11 = scalar_select 0, %s10, %s8
  %12 = sst [smem:[#allocation2]] %s6
  $region1: #{binary_classifier_forward.1} parent=0
    #allocation3 [shape = 'u8[131072]{0}', space=vmem, size = 0x20000, scoped, tag = 'input window, operand 0']
    #allocation4 [shape = 's32[2]{0}', space=sflag, size = 0x8, scoped, tag = 'scoped memory for binary_classifier_forward.1']
    #allocation5 [shape = 's32[2]{0}', space=sflag, size = 0x8, scoped, tag = 'scoped memory for binary_classifier_forward.1']
    #allocation6 [shape = 'u8[16384]{0}', space=vmem, size = 0x4000, scoped, tag = 'input window, operand 1, single buffered']
    #allocation7 [shape = 's32[1]{0}', space=sflag, size = 0x4, scoped, tag = 'scoped memory for binary_classifier_forward.1']
    #allocation8 [shape = 'u8[512]{0}', space=vmem, size = 0x400, scoped, tag = 'input window, operand 2, single buffered']
    #allocation9 [shape = 'u8[65536]{0}', space=vmem, size = 0x10000, scoped, tag = 'input window, operand 3, single buffered']
    #allocation10 [shape = 's32[1]{0}', space=sflag, size = 0x4, scoped, tag = 'scoped memory for binary_classifier_forward.1']
    #allocation11 [shape = 'u8[512]{0}', space=vmem, size = 0x400, scoped, tag = 'input window, operand 4, single buffered']
    #allocation12 [shape = 'u8[512]{0}', space=vmem, size = 0x400, scoped, tag = 'input window, operand 5, single buffered']
    #allocation13 [shape = 's32[1]{0}', space=sflag, size = 0x4, scoped, tag = 'scoped memory for binary_classifier_forward.1']
    #allocation14 [shape = 'u8[1024]{0}', space=vmem, size = 0x400, scoped, tag = 'output window, operand 0']
    %13 = vsyncpa [#allocation4], 0
    %s14 = scalar_lea.sflag [#allocation4], 1
    %15 = vsyncpa %s14, 0
    %16 = vsyncpa [#allocation7], 0
    %17 = vsyncpa [#allocation10], 0
    %18 = vsyncpa [#allocation13], 0
    %19 = vsyncpa [#allocation5], 0
    %s20 = scalar_lea.sflag [#allocation5], 1
    %21 = vsyncpa %s20, 0
    loop: start=0, step=1, limit=4
    $region2: #{binary_classifier_forward.1} parent=1 // loop_pre_header
      _
    $region3: #{binary_classifier_forward.1} parent=1 // loop_header
      %s23 = sphi 0, %s27
      %p24 = scmp.ge.s32.totalorder %s23, 4
      %s33 = sphi 0, %s35
      %s36 = sphi 0, %s33
      %s37 = sphi 0, %s36
      %s53 = sphi 0, %s37
      %s57 = sphi 0, %s57
      %s59 = sphi 0, %s57
      %s60 = sphi 0, %s59
      %s74 = sphi 0, %s60
      %s78 = sphi 0, %s78
      %s80 = sphi 0, %s78
      %s81 = sphi 0, %s80
      %s95 = sphi 0, %s81
      %s99 = sphi 0, %s99
      %s101 = sphi 0, %s99
      %s102 = sphi 0, %s101
      %s116 = sphi 0, %s102
      %s120 = sphi 0, %s120
      %s122 = sphi 0, %s120
      %s123 = sphi 0, %s122
      %s137 = sphi 0, %s123
      %s141 = sphi 0, %s141
      %s143 = sphi 0, %s141
      %s144 = sphi 0, %s143
      %s158 = sphi 0, %s144
      %s162 = sphi 0, %s162
      %s164 = sphi 0, %s162
      %s165 = sphi 0, %s164
      %s179 = sphi 0, %s165
      %s185 = sphi 0, %s187
      %s188 = sphi 0, %s185
      %s189 = sphi 0, %s188
      %s205 = sphi 0, %s189
    $region4: #{binary_classifier_forward.1} parent=1 // loop_header_branch
      %26 = sbr.rel (%p24) target = $region8
    $region5: #{binary_classifier_forward.1} parent=1 // loop_body
      %s28 = ssub.s32 %s23, 1
      %s29 = ssub.s32 %s23, 2
      %s30 = sadd.s32 %s23, 1
      %s31 = ssub.s32 %s23, %s30
      %p32 = scmp.eq.s32.totalorder %s31, 0
      %s34 = sadd.s32 %s33, 1
      %s35 = scalar_select %p32, %s33, %s34
      %p38 = pneg %p32
      %p39 = scmp.eq.s32.totalorder %s23, 1
      %p40 = por %p38, %p39
      %p41 = scmp.ne.s32.totalorder %s33, %s36
      %p42 = scmp.eq.s32.totalorder %s23, 0
      %p43 = por %p41, %p42
      %p44 = scmp.ne.s32.totalorder %s33, %s36
      %p45 = scmp.eq.s32.totalorder %s28, 1
      %p46 = por %p44, %p45
      %p47 = scmp.ne.s32.totalorder %s36, %s37
      %p48 = scmp.eq.s32.totalorder %s28, 0
      %p49 = por %p47, %p48
      %p50 = scmp.ne.s32.totalorder %s36, %s37
      %p51 = scmp.eq.s32.totalorder %s29, 1
      %p52 = por %p50, %p51
      %p54 = scmp.ne.s32.totalorder %s37, %s53
      %p55 = scmp.eq.s32.totalorder %s29, 0
      %p56 = por %p54, %p55
      %s58 = sadd.s32 %s57, 1
      %p61 = scmp.eq.s32.totalorder %s23, 1
      %p62 = scmp.ne.s32.totalorder %s57, %s59
      %p63 = scmp.eq.s32.totalorder %s23, 0
      %p64 = por %p62, %p63
      %p65 = scmp.ne.s32.totalorder %s57, %s59
      %p66 = scmp.eq.s32.totalorder %s28, 1
      %p67 = por %p65, %p66
      %p68 = scmp.ne.s32.totalorder %s59, %s60
      %p69 = scmp.eq.s32.totalorder %s28, 0
      %p70 = por %p68, %p69
      %p71 = scmp.ne.s32.totalorder %s59, %s60
      %p72 = scmp.eq.s32.totalorder %s29, 1
      %p73 = por %p71, %p72
      %p75 = scmp.ne.s32.totalorder %s60, %s74
      %p76 = scmp.eq.s32.totalorder %s29, 0
      %p77 = por %p75, %p76
      %s79 = sadd.s32 %s78, 1
      %p82 = scmp.eq.s32.totalorder %s23, 1
      %p83 = scmp.ne.s32.totalorder %s78, %s80
      %p84 = scmp.eq.s32.totalorder %s23, 0
      %p85 = por %p83, %p84
      %p86 = scmp.ne.s32.totalorder %s78, %s80
      %p87 = scmp.eq.s32.totalorder %s28, 1
      %p88 = por %p86, %p87
      %p89 = scmp.ne.s32.totalorder %s80, %s81
      %p90 = scmp.eq.s32.totalorder %s28, 0
      %p91 = por %p89, %p90
      %p92 = scmp.ne.s32.totalorder %s80, %s81
      %p93 = scmp.eq.s32.totalorder %s29, 1
      %p94 = por %p92, %p93
      %p96 = scmp.ne.s32.totalorder %s81, %s95
      %p97 = scmp.eq.s32.totalorder %s29, 0
      %p98 = por %p96, %p97
      %s100 = sadd.s32 %s99, 1
      %p103 = scmp.eq.s32.totalorder %s23, 1
      %p104 = scmp.ne.s32.totalorder %s99, %s101
      %p105 = scmp.eq.s32.totalorder %s23, 0
      %p106 = por %p104, %p105
      %p107 = scmp.ne.s32.totalorder %s99, %s101
      %p108 = scmp.eq.s32.totalorder %s28, 1
      %p109 = por %p107, %p108
      %p110 = scmp.ne.s32.totalorder %s101, %s102
      %p111 = scmp.eq.s32.totalorder %s28, 0
      %p112 = por %p110, %p111
      %p113 = scmp.ne.s32.totalorder %s101, %s102
      %p114 = scmp.eq.s32.totalorder %s29, 1
      %p115 = por %p113, %p114
      %p117 = scmp.ne.s32.totalorder %s102, %s116
      %p118 = scmp.eq.s32.totalorder %s29, 0
      %p119 = por %p117, %p118
      %s121 = sadd.s32 %s120, 1
      %p124 = scmp.eq.s32.totalorder %s23, 1
      %p125 = scmp.ne.s32.totalorder %s120, %s122
      %p126 = scmp.eq.s32.totalorder %s23, 0
      %p127 = por %p125, %p126
      %p128 = scmp.ne.s32.totalorder %s120, %s122
      %p129 = scmp.eq.s32.totalorder %s28, 1
      %p130 = por %p128, %p129
      %p131 = scmp.ne.s32.totalorder %s122, %s123
      %p132 = scmp.eq.s32.totalorder %s28, 0
      %p133 = por %p131, %p132
      %p134 = scmp.ne.s32.totalorder %s122, %s123
      %p135 = scmp.eq.s32.totalorder %s29, 1
      %p136 = por %p134, %p135
      %p138 = scmp.ne.s32.totalorder %s123, %s137
      %p139 = scmp.eq.s32.totalorder %s29, 0
      %p140 = por %p138, %p139
      %s142 = sadd.s32 %s141, 1
      %p145 = scmp.eq.s32.totalorder %s23, 1
      %p146 = scmp.ne.s32.totalorder %s141, %s143
      %p147 = scmp.eq.s32.totalorder %s23, 0
      %p148 = por %p146, %p147
      %p149 = scmp.ne.s32.totalorder %s141, %s143
      %p150 = scmp.eq.s32.totalorder %s28, 1
      %p151 = por %p149, %p150
      %p152 = scmp.ne.s32.totalorder %s143, %s144
      %p153 = scmp.eq.s32.totalorder %s28, 0
      %p154 = por %p152, %p153
      %p155 = scmp.ne.s32.totalorder %s143, %s144
      %p156 = scmp.eq.s32.totalorder %s29, 1
      %p157 = por %p155, %p156
      %p159 = scmp.ne.s32.totalorder %s144, %s158
      %p160 = scmp.eq.s32.totalorder %s29, 0
      %p161 = por %p159, %p160
      %s163 = sadd.s32 %s162, 1
      %p166 = scmp.eq.s32.totalorder %s23, 1
      %p167 = scmp.ne.s32.totalorder %s162, %s164
      %p168 = scmp.eq.s32.totalorder %s23, 0
      %p169 = por %p167, %p168
      %p170 = scmp.ne.s32.totalorder %s162, %s164
      %p171 = scmp.eq.s32.totalorder %s28, 1
      %p172 = por %p170, %p171
      %p173 = scmp.ne.s32.totalorder %s164, %s165
      %p174 = scmp.eq.s32.totalorder %s28, 0
      %p175 = por %p173, %p174
      %p176 = scmp.ne.s32.totalorder %s164, %s165
      %p177 = scmp.eq.s32.totalorder %s29, 1
      %p178 = por %p176, %p177
      %p180 = scmp.ne.s32.totalorder %s165, %s179
      %p181 = scmp.eq.s32.totalorder %s29, 0
      %p182 = por %p180, %p181
      %s183 = ssub.s32 %s23, %s30
      %p184 = scmp.eq.s32.totalorder %s183, 0
      %s186 = sadd.s32 %s185, 1
      %s187 = scalar_select %p184, %s185, %s186
      %p190 = pneg %p184
      %p191 = scmp.eq.s32.totalorder %s23, 1
      %p192 = por %p190, %p191
      %p193 = scmp.ne.s32.totalorder %s185, %s188
      %p194 = scmp.eq.s32.totalorder %s23, 0
      %p195 = por %p193, %p194
      %p196 = scmp.ne.s32.totalorder %s185, %s188
      %p197 = scmp.eq.s32.totalorder %s28, 1
      %p198 = por %p196, %p197
      %p199 = scmp.ne.s32.totalorder %s188, %s189
      %p200 = scmp.eq.s32.totalorder %s28, 0
      %p201 = por %p199, %p200
      %p202 = scmp.ne.s32.totalorder %s188, %s189
      %p203 = scmp.eq.s32.totalorder %s29, 1
      %p204 = por %p202, %p203
      %p206 = scmp.ne.s32.totalorder %s189, %s205
      %p207 = scmp.eq.s32.totalorder %s29, 0
      %p208 = por %p206, %p207
      %p209 = scmp.le.s32.totalorder 1, %s23
      %p210 = scmp.lt.s32.totalorder %s23, 3
      %p211 = pnand %p209, %p210
      %p212 = pneg %p211
      // Predicated region
      $region9: #{binary_classifier_forward.1} parent=5 // pred_check
        _
      $region10: #{binary_classifier_forward.1} parent=5 // pred_check_branch
        %214 = sbr.rel (%p211) target = $region12
      $region11: #{binary_classifier_forward.1} parent=5 // pred_region
        %s215 = ssub.s32 %s23, 1
        // Predicated region
        $region13: #{binary_classifier_forward.1} parent=11 // pred_check
          %p216 = pneg %p70
        $region14: #{binary_classifier_forward.1} parent=11 // pred_check_branch
          %218 = sbr.rel (%p216) target = $region16
        $region15: #{binary_classifier_forward.1} parent=11 // pred_region
          %s220 = ssub.s32 512, 512
          %221 = vsyncadd [#allocation7], %s220
          %s222 = sshll.u32 [#allocation6], 4
          %s223 = int_to_ptr.vmem [resolvable:$true] %s222
          %228 = dma.hbm_to_vmem [thread:$0]  %s1, 512, %s223, [#allocation7], 128, 128, 8
        $region16: #{binary_classifier_forward.1} parent=11 // pred_fallthru
          _
        // Predicated region
        $region17: #{binary_classifier_forward.1} parent=11 // pred_check
          %p229 = pneg %p91
        $region18: #{binary_classifier_forward.1} parent=11 // pred_check_branch
          %231 = sbr.rel (%p229) target = $region20
        $region19: #{binary_classifier_forward.1} parent=11 // pred_region
          %s233 = ssub.s32 16, 16
          %234 = vsyncadd [#allocation7], %s233
          %s236 = sshll.u32 [#allocation8], 4
          %s237 = int_to_ptr.vmem [resolvable:$true] %s236
          %239 = dma.hbm_to_vmem [thread:$0]  %s2, 16, %s237, [#allocation7]
        $region20: #{binary_classifier_forward.1} parent=11 // pred_fallthru
          _
        // Predicated region
        $region21: #{binary_classifier_forward.1} parent=11 // pred_check
          %p240 = pneg %p112
        $region22: #{binary_classifier_forward.1} parent=11 // pred_check_branch
          %242 = sbr.rel (%p240) target = $region24
        $region23: #{binary_classifier_forward.1} parent=11 // pred_region
          %s244 = ssub.s32 2048, 2048
          %245 = vsyncadd [#allocation10], %s244
          %s246 = sshll.u32 [#allocation9], 4
          %s247 = int_to_ptr.vmem [resolvable:$true] %s246
          %252 = dma.hbm_to_vmem [thread:$0]  %s3, 2048, %s247, [#allocation10], 128, 128, 8
        $region24: #{binary_classifier_forward.1} parent=11 // pred_fallthru
          _
        // Predicated region
        $region25: #{binary_classifier_forward.1} parent=11 // pred_check
          %p253 = pneg %p133
        $region26: #{binary_classifier_forward.1} parent=11 // pred_check_branch
          %255 = sbr.rel (%p253) target = $region28
        $region27: #{binary_classifier_forward.1} parent=11 // pred_region
          %s257 = ssub.s32 16, 16
          %258 = vsyncadd [#allocation10], %s257
          %s260 = sshll.u32 [#allocation11], 4
          %s261 = int_to_ptr.vmem [resolvable:$true] %s260
          %263 = dma.hbm_to_vmem [thread:$0]  %s4, 16, %s261, [#allocation10]
        $region28: #{binary_classifier_forward.1} parent=11 // pred_fallthru
          _
        // Predicated region
        $region29: #{binary_classifier_forward.1} parent=11 // pred_check
          %p264 = pneg %p154
        $region30: #{binary_classifier_forward.1} parent=11 // pred_check_branch
          %266 = sbr.rel (%p264) target = $region32
        $region31: #{binary_classifier_forward.1} parent=11 // pred_region
          %s268 = ssub.s32 16, 16
          %269 = vsyncadd [#allocation13], %s268
          %s271 = sshll.u32 [#allocation12], 4
          %s272 = int_to_ptr.vmem [resolvable:$true] %s271
          %274 = dma.hbm_to_vmem [thread:$0]  %s5, 16, %s272, [#allocation13]
        $region32: #{binary_classifier_forward.1} parent=11 // pred_fallthru
          _
        // Predicated region
        $region33: #{binary_classifier_forward.1} parent=11 // pred_check
          %p275 = pneg %p175
        $region34: #{binary_classifier_forward.1} parent=11 // pred_check_branch
          %277 = sbr.rel (%p275) target = $region36
        $region35: #{binary_classifier_forward.1} parent=11 // pred_region
          _
        $region36: #{binary_classifier_forward.1} parent=11 // pred_fallthru
          _
      $region12: #{binary_classifier_forward.1} parent=5 // pred_fallthru
        _
      %p278 = scmp.lt.s32.totalorder %s23, 2
      // Predicated region
      $region37: #{binary_classifier_forward.1} parent=5 // pred_check
        %p279 = pneg %p278
      $region38: #{binary_classifier_forward.1} parent=5 // pred_check_branch
        %281 = sbr.rel (%p279) target = $region40
      $region39: #{binary_classifier_forward.1} parent=5 // pred_region
        // Predicated region
        $region41: #{binary_classifier_forward.1} parent=39 // pred_check
          %p282 = pneg %p43
        $region42: #{binary_classifier_forward.1} parent=39 // pred_check_branch
          %284 = sbr.rel (%p282) target = $region44
        $region43: #{binary_classifier_forward.1} parent=39 // pred_region
          %s285 = sand.u32 %s33, 1
          %s286 = scalar_lea.sflag [#allocation4], %s285
          %s287 = sand.u32 %s33, 1
          %s288 = smul.addr %s287, 128
          %s289 = scalar_lea.vmem [#allocation3], %s288
          %s290 = smul.u32 16, %s23
          %s292 = ssub.s32 2048, 2048
          %293 = vsyncadd %s286, %s292
          %s294 = smul.addr %s290, 128
          %s295 = scalar_lea.hbm %s0, %s294
          %s296 = sshll.u32 %s289, 4
          %s297 = int_to_ptr.vmem [resolvable:$true] %s296
          %302 = dma.hbm_to_vmem [thread:$0]  %s295, 2048, %s297, %s286, 128, 128, 8
        $region44: #{binary_classifier_forward.1} parent=39 // pred_fallthru
          _
      $region40: #{binary_classifier_forward.1} parent=5 // pred_fallthru
        _
      %p303 = scmp.le.s32.totalorder 1, %s23
      %p304 = scmp.lt.s32.totalorder %s23, 3
      %p305 = pnand %p303, %p304
      %p306 = pneg %p305
      // Predicated region
      $region45: #{binary_classifier_forward.1} parent=5 // pred_check
        _
      $region46: #{binary_classifier_forward.1} parent=5 // pred_check_branch
        %308 = sbr.rel (%p305) target = $region48
      $region47: #{binary_classifier_forward.1} parent=5 // pred_region
        %s309 = ssub.s32 %s23, 1
        %s310 = sand.u32 %s36, 1
        %s311 = scalar_lea.sflag [#allocation4], %s310
        %s312 = sand.u32 %s36, 1
        %s313 = smul.addr %s312, 128
        %s314 = scalar_lea.vmem [#allocation3], %s313
        // Predicated region
        $region49: #{binary_classifier_forward.1} parent=47 // pred_check
          %p315 = pneg %p49
        $region50: #{binary_classifier_forward.1} parent=47 // pred_check_branch
          %317 = sbr.rel (%p315) target = $region52
        $region51: #{binary_classifier_forward.1} parent=47 // pred_region
          %318 = dma.done %s311, 2048
        $region52: #{binary_classifier_forward.1} parent=47 // pred_fallthru
          _
        // Predicated region
        $region53: #{binary_classifier_forward.1} parent=47 // pred_check
          %p319 = pneg %p70
        $region54: #{binary_classifier_forward.1} parent=47 // pred_check_branch
          %321 = sbr.rel (%p319) target = $region56
        $region55: #{binary_classifier_forward.1} parent=47 // pred_region
          %322 = dma.done [#allocation7], 512
        $region56: #{binary_classifier_forward.1} parent=47 // pred_fallthru
          _
        // Predicated region
        $region57: #{binary_classifier_forward.1} parent=47 // pred_check
          %p323 = pneg %p91
        $region58: #{binary_classifier_forward.1} parent=47 // pred_check_branch
          %325 = sbr.rel (%p323) target = $region60
        $region59: #{binary_classifier_forward.1} parent=47 // pred_region
          %326 = dma.done [#allocation7], 16
        $region60: #{binary_classifier_forward.1} parent=47 // pred_fallthru
          _
        // Predicated region
        $region61: #{binary_classifier_forward.1} parent=47 // pred_check
          %p327 = pneg %p112
        $region62: #{binary_classifier_forward.1} parent=47 // pred_check_branch
          %329 = sbr.rel (%p327) target = $region64
        $region63: #{binary_classifier_forward.1} parent=47 // pred_region
          %330 = dma.done [#allocation10], 2048
        $region64: #{binary_classifier_forward.1} parent=47 // pred_fallthru
          _
        // Predicated region
        $region65: #{binary_classifier_forward.1} parent=47 // pred_check
          %p331 = pneg %p133
        $region66: #{binary_classifier_forward.1} parent=47 // pred_check_branch
          %333 = sbr.rel (%p331) target = $region68
        $region67: #{binary_classifier_forward.1} parent=47 // pred_region
          %334 = dma.done [#allocation10], 16
        $region68: #{binary_classifier_forward.1} parent=47 // pred_fallthru
          _
        // Predicated region
        $region69: #{binary_classifier_forward.1} parent=47 // pred_check
          %p335 = pneg %p154
        $region70: #{binary_classifier_forward.1} parent=47 // pred_check_branch
          %337 = sbr.rel (%p335) target = $region72
        $region71: #{binary_classifier_forward.1} parent=47 // pred_region
          %338 = dma.done [#allocation13], 16
        $region72: #{binary_classifier_forward.1} parent=47 // pred_fallthru
          _
        %s339 = sand.u32 %s36, 1
        %s340 = scalar_lea.sflag [#allocation4], %s339
        %s341 = sand.u32 %s36, 1
        %s342 = smul.addr %s341, 128
        %s343 = scalar_lea.vmem [#allocation3], %s342
        %p344 = pneg %p49
        %p345 = pneg %p46
        %p346 = pneg %p70
        %p347 = pneg %p67
        %p348 = pneg %p91
        %p349 = pneg %p88
        %p350 = pneg %p112
        %p351 = pneg %p109
        %p352 = pneg %p133
        %p353 = pneg %p130
        %p354 = pneg %p154
        %p355 = pneg %p151
        %p356 = pneg %p175
        %p357 = pneg %p172
        %p358 = pneg %p201
        %p359 = pneg %p198
        %s360 = sand.u32 %s188, 1
        %s361 = scalar_lea.sflag [#allocation5], %s360
        %s362 = sand.u32 %s188, 1
        %s363 = scalar_lea.vmem [#allocation14], %s362
        %s364 = smul.u32 16, %s28
        %v365 = vld [vmem:[%s314] sm:$0xff]
        %v366 = vld [vmem:[%s314 + $0x8] sm:$0xff]
        %v367 = vld [vmem:[%s314 + $0x10] sm:$0xff]
        %v368 = vld [vmem:[%s314 + $0x18] sm:$0xff]
        %v369 = vld [vmem:[%s314 + $0x20] sm:$0xff]
        %v370 = vld [vmem:[%s314 + $0x28] sm:$0xff]
        %v371 = vld [vmem:[%s314 + $0x30] sm:$0xff]
        %v372 = vld [vmem:[%s314 + $0x38] sm:$0xff]
        %v373 = vld [vmem:[%s314 + $0x40] sm:$0xff]
        %v374 = vld [vmem:[%s314 + $0x48] sm:$0xff]
        %v375 = vld [vmem:[%s314 + $0x50] sm:$0xff]
        %v376 = vld [vmem:[%s314 + $0x58] sm:$0xff]
        %v377 = vld [vmem:[%s314 + $0x60] sm:$0xff]
        %v378 = vld [vmem:[%s314 + $0x68] sm:$0xff]
        %v379 = vld [vmem:[%s314 + $0x70] sm:$0xff]
        %v380 = vld [vmem:[%s314 + $0x78] sm:$0xff]
        %v381 = vld [vmem:[#allocation6] sm:$0xff]
        %v382 = vld [vmem:[#allocation6 + $0x8] sm:$0xff]
        %v383 = vld [vmem:[#allocation6 + $0x10] sm:$0xff]
        %v384 = vld [vmem:[#allocation6 + $0x18] sm:$0xff]
        %v385 = vld [vmem:[#allocation8] sm:$0x1]
        %v387 = vlaneseq
        %v388 = vshrl.u32 %v387, 7
        %v389 = vsub.s32 0, %v388
        %v390 = vrot.slane %v385, %v389
        %vm392 = vcmask 261120
        %v394 = vsel %vm392, %v365, 0
        %v397 = vsel %vm392, %v366, 0
        %v400 = vsel %vm392, %v367, 0
        %v403 = vsel %vm392, %v368, 0
        %v406 = vsel %vm392, %v369, 0
        %v409 = vsel %vm392, %v370, 0
        %v412 = vsel %vm392, %v371, 0
        %v415 = vsel %vm392, %v372, 0
        %v418 = vsel %vm392, %v373, 0
        %v421 = vsel %vm392, %v374, 0
        %v424 = vsel %vm392, %v375, 0
        %v427 = vsel %vm392, %v376, 0
        %v430 = vsel %vm392, %v377, 0
        %v433 = vsel %vm392, %v378, 0
        %v436 = vsel %vm392, %v379, 0
        %v439 = vsel %vm392, %v380, 0
        %441 = vmatprep.subr.mxu0 0.0
        %442 = vmatpush1.msra.mxu0 %v381
        %443 = vmatprep.subr.mxu0 0.0
        %444 = vmatpush1.msra.mxu0 %v382
        %445 = vmatprep.subr.mxu0 0.0
        %446 = vmatpush1.msra.mxu0 %v383
        %447 = vmatprep.subr.mxu0 0.0
        %448 = vmatpush1.msra.mxu0 %v384
        %449 = vmatprep.subr.mxu0 0.0
        %450 = vmatpush1.msra.mxu0 0.0
        %451 = vmatprep.subr.mxu0 0.0
        %452 = vmatpush1.msra.mxu0 0.0
        %453 = vmatprep.subr.mxu0 0.0
        %454 = vmatpush1.msra.mxu0 0.0
        %455 = vmatprep.subr.mxu0 0.0
        %456 = vmatpush1.msra.mxu0 0.0
        %457 = vmatprep.subr.mxu0 0.0
        %458 = vmatpush1.msra.mxu0 0.0
        %459 = vmatprep.subr.mxu0 0.0
        %460 = vmatpush1.msra.mxu0 0.0
        %461 = vmatprep.subr.mxu0 0.0
        %462 = vmatpush1.msra.mxu0 0.0
        %463 = vmatprep.subr.mxu0 0.0
        %464 = vmatpush1.msra.mxu0 0.0
        %465 = vmatprep.subr.mxu0 0.0
        %466 = vmatpush1.msra.mxu0 0.0
        %467 = vmatprep.subr.mxu0 0.0
        %468 = vmatpush1.msra.mxu0 0.0
        %469 = vmatprep.subr.mxu0 0.0
        %470 = vmatpush1.msra.mxu0 0.0
        %471 = vmatprep.subr.mxu0 0.0
        %472 = vmatpush1.msra.mxu0 0.0
        %473 = vmatprep.subr.mxu0 0.0
        %474 = vmatpush1.msra.mxu0 0.0
        %475 = vmatprep.subr.mxu0 0.0
        %476 = vmatpush1.msra.mxu0 0.0
        %477 = vmatprep.subr.mxu0 0.0
        %478 = vmatpush1.msra.mxu0 0.0
        %479 = vmatprep.subr.mxu0 0.0
        %480 = vmatpush1.msra.mxu0 0.0
        %481 = vmatprep.subr.mxu0 0.0
        %482 = vmatpush1.msra.mxu0 0.0
        %483 = vmatprep.subr.mxu0 0.0
        %484 = vmatpush1.msra.mxu0 0.0
        %485 = vmatprep.subr.mxu0 0.0
        %486 = vmatpush1.msra.mxu0 0.0
        %487 = vmatprep.subr.mxu0 0.0
        %488 = vmatpush1.msra.mxu0 0.0
        %489 = vmatprep.subr.mxu0 0.0
        %490 = vmatpush1.msra.mxu0 0.0
        %491 = vmatprep.subr.mxu0 0.0
        %492 = vmatpush1.msra.mxu0 0.0
        %493 = vmatprep.subr.mxu0 0.0
        %494 = vmatpush1.msra.mxu0 0.0
        %495 = vmatprep.subr.mxu0 0.0
        %496 = vmatpush1.msra.mxu0 0.0
        %497 = vmatprep.subr.mxu0 0.0
        %498 = vmatpush1.msra.mxu0 0.0
        %499 = vmatprep.subr.mxu0 0.0
        %500 = vmatpush1.msra.mxu0 0.0
        %501 = vmatprep.subr.mxu0 0.0
        %502 = vmatpush1.msra.mxu0 0.0
        %503 = vmatprep.subr.mxu0 0.0
        %504 = vmatpush1.msra.mxu0 0.0
        %505 = vmatprep.mubr.f32.mxu0 0.0
        %506 = vmatmul.mubr.f32.gmra.mrb[0].mxu0 %v394
        %v507 = vpop.f32.mrb[0].mxu0
        %v508 = vadd.f32 %v390, %v507
        %v509 = vpop.f32.mrb[0].mxu0
        %510 = vmatprep.mubr.f32.mxu0 0.0
        %511 = vmatmul.mubr.f32.gmra.mrb[0].mxu0 %v397
        %v512 = vpop.f32.mrb[0].mxu0
        %v513 = vadd.f32 %v390, %v512
        %v514 = vpop.f32.mrb[0].mxu0
        %515 = vmatprep.mubr.f32.mxu0 0.0
        %516 = vmatmul.mubr.f32.gmra.mrb[0].mxu0 %v400
        %v517 = vpop.f32.mrb[0].mxu0
        %v518 = vadd.f32 %v390, %v517
        %v519 = vpop.f32.mrb[0].mxu0
        %520 = vmatprep.mubr.f32.mxu0 0.0
        %521 = vmatmul.mubr.f32.gmra.mrb[0].mxu0 %v403
        %v522 = vpop.f32.mrb[0].mxu0
        %v523 = vadd.f32 %v390, %v522
        %v524 = vpop.f32.mrb[0].mxu0
        %525 = vmatprep.mubr.f32.mxu0 0.0
        %526 = vmatmul.mubr.f32.gmra.mrb[0].mxu0 %v406
        %v527 = vpop.f32.mrb[0].mxu0
        %v528 = vadd.f32 %v390, %v527
        %v529 = vpop.f32.mrb[0].mxu0
        %530 = vmatprep.mubr.f32.mxu0 0.0
        %531 = vmatmul.mubr.f32.gmra.mrb[0].mxu0 %v409
        %v532 = vpop.f32.mrb[0].mxu0
        %v533 = vadd.f32 %v390, %v532
        %v534 = vpop.f32.mrb[0].mxu0
        %535 = vmatprep.mubr.f32.mxu0 0.0
        %536 = vmatmul.mubr.f32.gmra.mrb[0].mxu0 %v412
        %v537 = vpop.f32.mrb[0].mxu0
        %v538 = vadd.f32 %v390, %v537
        %v539 = vpop.f32.mrb[0].mxu0
        %540 = vmatprep.mubr.f32.mxu0 0.0
        %541 = vmatmul.mubr.f32.gmra.mrb[0].mxu0 %v415
        %v542 = vpop.f32.mrb[0].mxu0
        %v543 = vadd.f32 %v390, %v542
        %v544 = vpop.f32.mrb[0].mxu0
        %545 = vmatprep.mubr.f32.mxu0 0.0
        %546 = vmatmul.mubr.f32.gmra.mrb[0].mxu0 %v418
        %v547 = vpop.f32.mrb[0].mxu0
        %v548 = vadd.f32 %v390, %v547
        %v549 = vpop.f32.mrb[0].mxu0
        %550 = vmatprep.mubr.f32.mxu0 0.0
        %551 = vmatmul.mubr.f32.gmra.mrb[0].mxu0 %v421
        %v552 = vpop.f32.mrb[0].mxu0
        %v553 = vadd.f32 %v390, %v552
        %v554 = vpop.f32.mrb[0].mxu0
        %555 = vmatprep.mubr.f32.mxu0 0.0
        %556 = vmatmul.mubr.f32.gmra.mrb[0].mxu0 %v424
        %v557 = vpop.f32.mrb[0].mxu0
        %v558 = vadd.f32 %v390, %v557
        %v559 = vpop.f32.mrb[0].mxu0
        %560 = vmatprep.mubr.f32.mxu0 0.0
        %561 = vmatmul.mubr.f32.gmra.mrb[0].mxu0 %v427
        %v562 = vpop.f32.mrb[0].mxu0
        %v563 = vadd.f32 %v390, %v562
        %v564 = vpop.f32.mrb[0].mxu0
        %565 = vmatprep.mubr.f32.mxu0 0.0
        %566 = vmatmul.mubr.f32.gmra.mrb[0].mxu0 %v430
        %v567 = vpop.f32.mrb[0].mxu0
        %v568 = vadd.f32 %v390, %v567
        %v569 = vpop.f32.mrb[0].mxu0
        %570 = vmatprep.mubr.f32.mxu0 0.0
        %571 = vmatmul.mubr.f32.gmra.mrb[0].mxu0 %v433
        %v572 = vpop.f32.mrb[0].mxu0
        %v573 = vadd.f32 %v390, %v572
        %v574 = vpop.f32.mrb[0].mxu0
        %575 = vmatprep.mubr.f32.mxu0 0.0
        %576 = vmatmul.mubr.f32.gmra.mrb[0].mxu0 %v436
        %v577 = vpop.f32.mrb[0].mxu0
        %v578 = vadd.f32 %v390, %v577
        %v579 = vpop.f32.mrb[0].mxu0
        %580 = vmatprep.mubr.f32.mxu0 0.0
        %581 = vmatmul.mubr.f32.gmra.mrb[0].mxu0 %v439
        %v582 = vpop.f32.mrb[0].mxu0
        %v583 = vadd.f32 %v390, %v582
        %v584 = vpop.f32.mrb[0].mxu0
        %585 = vdwg.mxu0
        %v586 = vmax.f32 %v508, 0.0
        %v587 = vmax.f32 %v513, 0.0
        %v588 = vmax.f32 %v518, 0.0
        %v589 = vmax.f32 %v523, 0.0
        %v590 = vmax.f32 %v528, 0.0
        %v591 = vmax.f32 %v533, 0.0
        %v592 = vmax.f32 %v538, 0.0
        %v593 = vmax.f32 %v543, 0.0
        %v594 = vmax.f32 %v548, 0.0
        %v595 = vmax.f32 %v553, 0.0
        %v596 = vmax.f32 %v558, 0.0
        %v597 = vmax.f32 %v563, 0.0
        %v598 = vmax.f32 %v568, 0.0
        %v599 = vmax.f32 %v573, 0.0
        %v600 = vmax.f32 %v578, 0.0
        %v601 = vmax.f32 %v583, 0.0
        %v602 = vld [vmem:[#allocation9] sm:$0xff]
        %v603 = vld [vmem:[#allocation9 + $0x8] sm:$0xff]
        %v604 = vld [vmem:[#allocation9 + $0x10] sm:$0xff]
        %v605 = vld [vmem:[#allocation9 + $0x18] sm:$0xff]
        %v606 = vld [vmem:[#allocation9 + $0x20] sm:$0xff]
        %v607 = vld [vmem:[#allocation9 + $0x28] sm:$0xff]
        %v608 = vld [vmem:[#allocation9 + $0x30] sm:$0xff]
        %v609 = vld [vmem:[#allocation9 + $0x38] sm:$0xff]
        %v610 = vld [vmem:[#allocation9 + $0x40] sm:$0xff]
        %v611 = vld [vmem:[#allocation9 + $0x48] sm:$0xff]
        %v612 = vld [vmem:[#allocation9 + $0x50] sm:$0xff]
        %v613 = vld [vmem:[#allocation9 + $0x58] sm:$0xff]
        %v614 = vld [vmem:[#allocation9 + $0x60] sm:$0xff]
        %v615 = vld [vmem:[#allocation9 + $0x68] sm:$0xff]
        %v616 = vld [vmem:[#allocation9 + $0x70] sm:$0xff]
        %v617 = vld [vmem:[#allocation9 + $0x78] sm:$0xff]
        %v618 = vld [vmem:[#allocation11] sm:$0x1]
        %v620 = vlaneseq
        %v621 = vshrl.u32 %v620, 7
        %v622 = vsub.s32 0, %v621
        %v623 = vrot.slane %v618, %v622
        %625 = vmatprep.subr.mxu0 0.0
        %626 = vmatpush1.msra.mxu0 %v602
        %627 = vmatprep.subr.mxu0 0.0
        %628 = vmatpush1.msra.mxu0 %v603
        %629 = vmatprep.subr.mxu0 0.0
        %630 = vmatpush1.msra.mxu0 %v604
        %631 = vmatprep.subr.mxu0 0.0
        %632 = vmatpush1.msra.mxu0 %v605
        %633 = vmatprep.subr.mxu0 0.0
        %634 = vmatpush1.msra.mxu0 %v606
        %635 = vmatprep.subr.mxu0 0.0
        %636 = vmatpush1.msra.mxu0 %v607
        %637 = vmatprep.subr.mxu0 0.0
        %638 = vmatpush1.msra.mxu0 %v608
        %639 = vmatprep.subr.mxu0 0.0
        %640 = vmatpush1.msra.mxu0 %v609
        %641 = vmatprep.subr.mxu0 0.0
        %642 = vmatpush1.msra.mxu0 %v610
        %643 = vmatprep.subr.mxu0 0.0
        %644 = vmatpush1.msra.mxu0 %v611
        %645 = vmatprep.subr.mxu0 0.0
        %646 = vmatpush1.msra.mxu0 %v612
        %647 = vmatprep.subr.mxu0 0.0
        %648 = vmatpush1.msra.mxu0 %v613
        %649 = vmatprep.subr.mxu0 0.0
        %650 = vmatpush1.msra.mxu0 %v614
        %651 = vmatprep.subr.mxu0 0.0
        %652 = vmatpush1.msra.mxu0 %v615
        %653 = vmatprep.subr.mxu0 0.0
        %654 = vmatpush1.msra.mxu0 %v616
        %655 = vmatprep.subr.mxu0 0.0
        %656 = vmatpush1.msra.mxu0 %v617
        %657 = vmatprep.subr.mxu0 0.0
        %658 = vmatpush1.msra.mxu0 0.0
        %659 = vmatprep.subr.mxu0 0.0
        %660 = vmatpush1.msra.mxu0 0.0
        %661 = vmatprep.subr.mxu0 0.0
        %662 = vmatpush1.msra.mxu0 0.0
        %663 = vmatprep.subr.mxu0 0.0
        %664 = vmatpush1.msra.mxu0 0.0
        %665 = vmatprep.subr.mxu0 0.0
        %666 = vmatpush1.msra.mxu0 0.0
        %667 = vmatprep.subr.mxu0 0.0
        %668 = vmatpush1.msra.mxu0 0.0
        %669 = vmatprep.subr.mxu0 0.0
        %670 = vmatpush1.msra.mxu0 0.0
        %671 = vmatprep.subr.mxu0 0.0
        %672 = vmatpush1.msra.mxu0 0.0
        %673 = vmatprep.subr.mxu0 0.0
        %674 = vmatpush1.msra.mxu0 0.0
        %675 = vmatprep.subr.mxu0 0.0
        %676 = vmatpush1.msra.mxu0 0.0
        %677 = vmatprep.subr.mxu0 0.0
        %678 = vmatpush1.msra.mxu0 0.0
        %679 = vmatprep.subr.mxu0 0.0
        %680 = vmatpush1.msra.mxu0 0.0
        %681 = vmatprep.subr.mxu0 0.0
        %682 = vmatpush1.msra.mxu0 0.0
        %683 = vmatprep.subr.mxu0 0.0
        %684 = vmatpush1.msra.mxu0 0.0
        %685 = vmatprep.subr.mxu0 0.0
        %686 = vmatpush1.msra.mxu0 0.0
        %687 = vmatprep.subr.mxu0 0.0
        %688 = vmatpush1.msra.mxu0 0.0
        %689 = vmatprep.mubr.f32.mxu0 0.0
        %690 = vmatmul.mubr.f32.gmra.mrb[0].mxu0 %v586
        %v691 = vpop.f32.mrb[0].mxu0
        %v692 = vadd.f32 %v623, %v691
        %v693 = vpop.f32.mrb[0].mxu0
        %694 = vmatprep.mubr.f32.mxu0 0.0
        %695 = vmatmul.mubr.f32.gmra.mrb[0].mxu0 %v587
        %v696 = vpop.f32.mrb[0].mxu0
        %v697 = vadd.f32 %v623, %v696
        %v698 = vpop.f32.mrb[0].mxu0
        %699 = vmatprep.mubr.f32.mxu0 0.0
        %700 = vmatmul.mubr.f32.gmra.mrb[0].mxu0 %v588
        %v701 = vpop.f32.mrb[0].mxu0
        %v702 = vadd.f32 %v623, %v701
        %v703 = vpop.f32.mrb[0].mxu0
        %704 = vmatprep.mubr.f32.mxu0 0.0
        %705 = vmatmul.mubr.f32.gmra.mrb[0].mxu0 %v589
        %v706 = vpop.f32.mrb[0].mxu0
        %v707 = vadd.f32 %v623, %v706
        %v708 = vpop.f32.mrb[0].mxu0
        %709 = vmatprep.mubr.f32.mxu0 0.0
        %710 = vmatmul.mubr.f32.gmra.mrb[0].mxu0 %v590
        %v711 = vpop.f32.mrb[0].mxu0
        %v712 = vadd.f32 %v623, %v711
        %v713 = vpop.f32.mrb[0].mxu0
        %714 = vmatprep.mubr.f32.mxu0 0.0
        %715 = vmatmul.mubr.f32.gmra.mrb[0].mxu0 %v591
        %v716 = vpop.f32.mrb[0].mxu0
        %v717 = vadd.f32 %v623, %v716
        %v718 = vpop.f32.mrb[0].mxu0
        %719 = vmatprep.mubr.f32.mxu0 0.0
        %720 = vmatmul.mubr.f32.gmra.mrb[0].mxu0 %v592
        %v721 = vpop.f32.mrb[0].mxu0
        %v722 = vadd.f32 %v623, %v721
        %v723 = vpop.f32.mrb[0].mxu0
        %724 = vmatprep.mubr.f32.mxu0 0.0
        %725 = vmatmul.mubr.f32.gmra.mrb[0].mxu0 %v593
        %v726 = vpop.f32.mrb[0].mxu0
        %v727 = vadd.f32 %v623, %v726
        %v728 = vpop.f32.mrb[0].mxu0
        %729 = vmatprep.mubr.f32.mxu0 0.0
        %730 = vmatmul.mubr.f32.gmra.mrb[0].mxu0 %v594
        %v731 = vpop.f32.mrb[0].mxu0
        %v732 = vadd.f32 %v623, %v731
        %v733 = vpop.f32.mrb[0].mxu0
        %734 = vmatprep.mubr.f32.mxu0 0.0
        %735 = vmatmul.mubr.f32.gmra.mrb[0].mxu0 %v595
        %v736 = vpop.f32.mrb[0].mxu0
        %v737 = vadd.f32 %v623, %v736
        %v738 = vpop.f32.mrb[0].mxu0
        %739 = vmatprep.mubr.f32.mxu0 0.0
        %740 = vmatmul.mubr.f32.gmra.mrb[0].mxu0 %v596
        %v741 = vpop.f32.mrb[0].mxu0
        %v742 = vadd.f32 %v623, %v741
        %v743 = vpop.f32.mrb[0].mxu0
        %744 = vmatprep.mubr.f32.mxu0 0.0
        %745 = vmatmul.mubr.f32.gmra.mrb[0].mxu0 %v597
        %v746 = vpop.f32.mrb[0].mxu0
        %v747 = vadd.f32 %v623, %v746
        %v748 = vpop.f32.mrb[0].mxu0
        %749 = vmatprep.mubr.f32.mxu0 0.0
        %750 = vmatmul.mubr.f32.gmra.mrb[0].mxu0 %v598
        %v751 = vpop.f32.mrb[0].mxu0
        %v752 = vadd.f32 %v623, %v751
        %v753 = vpop.f32.mrb[0].mxu0
        %754 = vmatprep.mubr.f32.mxu0 0.0
        %755 = vmatmul.mubr.f32.gmra.mrb[0].mxu0 %v599
        %v756 = vpop.f32.mrb[0].mxu0
        %v757 = vadd.f32 %v623, %v756
        %v758 = vpop.f32.mrb[0].mxu0
        %759 = vmatprep.mubr.f32.mxu0 0.0
        %760 = vmatmul.mubr.f32.gmra.mrb[0].mxu0 %v600
        %v761 = vpop.f32.mrb[0].mxu0
        %v762 = vadd.f32 %v623, %v761
        %v763 = vpop.f32.mrb[0].mxu0
        %764 = vmatprep.mubr.f32.mxu0 0.0
        %765 = vmatmul.mubr.f32.gmra.mrb[0].mxu0 %v601
        %v766 = vpop.f32.mrb[0].mxu0
        %v767 = vadd.f32 %v623, %v766
        %v768 = vpop.f32.mrb[0].mxu0
        %769 = vdwg.mxu0
        %v770 = vmax.f32 %v692, 0.0
        %v771 = vmax.f32 %v697, 0.0
        %v772 = vmax.f32 %v702, 0.0
        %v773 = vmax.f32 %v707, 0.0
        %v774 = vmax.f32 %v712, 0.0
        %v775 = vmax.f32 %v717, 0.0
        %v776 = vmax.f32 %v722, 0.0
        %v777 = vmax.f32 %v727, 0.0
        %v778 = vmax.f32 %v732, 0.0
        %v779 = vmax.f32 %v737, 0.0
        %v780 = vmax.f32 %v742, 0.0
        %v781 = vmax.f32 %v747, 0.0
        %v782 = vmax.f32 %v752, 0.0
        %v783 = vmax.f32 %v757, 0.0
        %v784 = vmax.f32 %v762, 0.0
        %v785 = vmax.f32 %v767, 0.0
        %v786 = vld [vmem:[#allocation12] sm:$0x1]
        %s787 = sld [smem:[#allocation2]]
        %v788 = vstv %s787
        %789 = vmatprep.subr.mxu0 0.0
        %790 = vmatpush1.xpose.msra.mxu0 %v770
        %791 = vmatprep.subr.mxu0 0.0
        %792 = vmatpush1.xpose.msra.mxu0 %v771
        %793 = vmatprep.subr.mxu0 0.0
        %794 = vmatpush1.xpose.msra.mxu0 %v772
        %795 = vmatprep.subr.mxu0 0.0
        %796 = vmatpush1.xpose.msra.mxu0 %v773
        %797 = vmatprep.subr.mxu0 0.0
        %798 = vmatpush1.xpose.msra.mxu0 %v774
        %799 = vmatprep.subr.mxu0 0.0
        %800 = vmatpush1.xpose.msra.mxu0 %v775
        %801 = vmatprep.subr.mxu0 0.0
        %802 = vmatpush1.xpose.msra.mxu0 %v776
        %803 = vmatprep.subr.mxu0 0.0
        %804 = vmatpush1.xpose.msra.mxu0 %v777
        %805 = vmatprep.subr.mxu0 0.0
        %806 = vmatpush1.xpose.msra.mxu0 %v778
        %807 = vmatprep.subr.mxu0 0.0
        %808 = vmatpush1.xpose.msra.mxu0 %v779
        %809 = vmatprep.subr.mxu0 0.0
        %810 = vmatpush1.xpose.msra.mxu0 %v780
        %811 = vmatprep.subr.mxu0 0.0
        %812 = vmatpush1.xpose.msra.mxu0 %v781
        %813 = vmatprep.subr.mxu0 0.0
        %814 = vmatpush1.xpose.msra.mxu0 %v782
        %815 = vmatprep.subr.mxu0 0.0
        %816 = vmatpush1.xpose.msra.mxu0 %v783
        %817 = vmatprep.subr.mxu0 0.0
        %818 = vmatpush1.xpose.msra.mxu0 %v784
        %819 = vmatprep.subr.mxu0 0.0
        %820 = vmatpush1.xpose.msra.mxu0 %v785
        %821 = vmatprep.subr.mxu0 0.0
        %822 = vmatpush1.xpose.msra.mxu0 0.0
        %823 = vmatprep.subr.mxu0 0.0
        %824 = vmatpush1.xpose.msra.mxu0 0.0
        %825 = vmatprep.subr.mxu0 0.0
        %826 = vmatpush1.xpose.msra.mxu0 0.0
        %827 = vmatprep.subr.mxu0 0.0
        %828 = vmatpush1.xpose.msra.mxu0 0.0
        %829 = vmatprep.subr.mxu0 0.0
        %830 = vmatpush1.xpose.msra.mxu0 0.0
        %831 = vmatprep.subr.mxu0 0.0
        %832 = vmatpush1.xpose.msra.mxu0 0.0
        %833 = vmatprep.subr.mxu0 0.0
        %834 = vmatpush1.xpose.msra.mxu0 0.0
        %835 = vmatprep.subr.mxu0 0.0
        %836 = vmatpush1.xpose.msra.mxu0 0.0
        %837 = vmatprep.subr.mxu0 0.0
        %838 = vmatpush1.xpose.msra.mxu0 0.0
        %839 = vmatprep.subr.mxu0 0.0
        %840 = vmatpush1.xpose.msra.mxu0 0.0
        %841 = vmatprep.subr.mxu0 0.0
        %842 = vmatpush1.xpose.msra.mxu0 0.0
        %843 = vmatprep.subr.mxu0 0.0
        %844 = vmatpush1.xpose.msra.mxu0 0.0
        %845 = vmatprep.subr.mxu0 0.0
        %846 = vmatpush1.xpose.msra.mxu0 0.0
        %847 = vmatprep.subr.mxu0 0.0
        %848 = vmatpush1.xpose.msra.mxu0 0.0
        %849 = vmatprep.subr.mxu0 0.0
        %850 = vmatpush1.xpose.msra.mxu0 0.0
        %851 = vmatprep.subr.mxu0 0.0
        %852 = vmatpush1.xpose.msra.mxu0 0.0
        %853 = vmatprep.mubr.f32.mxu0 0.0
        %854 = vmatmul.mubr.f32.gmra.mrb[0].mxu0 %v786
        %v855 = vpop.f32.mrb[0].mxu0
        %v856 = vadd.f32 %v788, %v855
        %v857 = vpop.f32.mrb[0].mxu0
        %858 = vdwg.mxu0
        %v859 = vxor.u32 %v856, 2147483648
        %v860 = vmul.f32 %v859, 1.442695
        %v861 = vpow.pop %v860
        %v862 = vadd.f32 %v861, 1.0
        %v863 = vrcp.pop %v862
        %v864 = vmul.f32 1.0, %v863
        %865 = vst [vmem:[%s363] sm:$0x1] %v864
        %s866 = sand.u32 %s188, 1
        %s867 = scalar_lea.sflag [#allocation5], %s866
        %s868 = sand.u32 %s188, 1
        %s869 = scalar_lea.vmem [#allocation14], %s868
        // Predicated region
        $region73: #{binary_classifier_forward.1} parent=47 // pred_check
          %p870 = pneg %p198
        $region74: #{binary_classifier_forward.1} parent=47 // pred_check_branch
          %872 = sbr.rel (%p870) target = $region76
        $region75: #{binary_classifier_forward.1} parent=47 // pred_region
          %s874 = ssub.s32 16, 16
          %875 = vsyncadd %s867, %s874
          %s876 = smul.addr %s28, 16
          %s877 = scalar_lea.hbm %s7, %s876
          %s879 = sshll.u32 %s869, 4
          %s880 = int_to_ptr.vmem [resolvable:$true] %s879
          %882 = dma.vmem_to_hbm [thread:$0]  %s880, 16, %s877, %s867
        $region76: #{binary_classifier_forward.1} parent=47 // pred_fallthru
          _
      $region48: #{binary_classifier_forward.1} parent=5 // pred_fallthru
        _
      %p883 = scmp.le.s32.totalorder 2, %s23
      // Predicated region
      $region77: #{binary_classifier_forward.1} parent=5 // pred_check
        %p884 = pneg %p883
      $region78: #{binary_classifier_forward.1} parent=5 // pred_check_branch
        %886 = sbr.rel (%p884) target = $region80
      $region79: #{binary_classifier_forward.1} parent=5 // pred_region
        %s887 = ssub.s32 %s23, 2
        // Predicated region
        $region81: #{binary_classifier_forward.1} parent=79 // pred_check
          %p888 = pneg %p204
        $region82: #{binary_classifier_forward.1} parent=79 // pred_check_branch
          %890 = sbr.rel (%p888) target = $region84
        $region83: #{binary_classifier_forward.1} parent=79 // pred_region
          %s891 = sand.u32 %s189, 1
          %s892 = scalar_lea.sflag [#allocation5], %s891
          %s893 = sand.u32 %s189, 1
          %s894 = scalar_lea.vmem [#allocation14], %s893
          %895 = dma.done %s892, 16
        $region84: #{binary_classifier_forward.1} parent=79 // pred_fallthru
          _
      $region80: #{binary_classifier_forward.1} parent=5 // pred_fallthru
        _
    $region6: #{binary_classifier_forward.1} parent=1 // loop_footer
      %s27 = sadd.s32 1, %s23
    $region7: #{binary_classifier_forward.1} parent=1 // loop_footer_branch
      %22 = sbr.rel target = $region3
    $region8: #{binary_classifier_forward.1} parent=1 // loop_exit
      _
    %896 = vsyncpa [#allocation4], 1
    %s897 = scalar_lea.sflag [#allocation4], 1
    %898 = vsyncpa %s897, 1
    %899 = vsyncpa [#allocation7], 1
    %900 = vsyncpa [#allocation10], 1
    %901 = vsyncpa [#allocation13], 1
    %902 = vsyncpa [#allocation5], 1
    %s903 = scalar_lea.sflag [#allocation5], 1
    %904 = vsyncpa %s903, 1

</llo_original>
